<compile_context>
chip_gen: v5e
topology: v5e:2x2
jax: 0.10.0
libtpu: 0.0.40
codegen_flags: <defaults>
</compile_context>

<pallas_src>
import math

import jax
import jax.numpy as jnp
from jax.experimental import pallas as pl
from jax.experimental.pallas import tpu as pltpu

_LANE = 128
_SUBLANE = 8


def _round_up(x, m):
    return ((x + m - 1) // m) * m


def _drop_path_kernel(scale_ref, x_ref, o_ref):
    # scale_ref: (rows_tile, 1)   f32 VMEM — per-row scale (0 or 1/keep_prob).
    # x_ref/o_ref: (rows_tile, 128) VMEM tile of the flattened batch.
    x = x_ref[...].astype(jnp.float32)
    s = scale_ref[...]                       # (rows_tile, 1) -> lane broadcast
    o_ref[...] = (x * s).astype(o_ref.dtype)


def drop_path_pallas(x, drop_prob, *, training, key):
    """Pallas implementation of DropPath.forward.

    x:         (B, ...) array — any rank >= 2 (NCHW in the CNN use case).
    drop_prob: float or None.
    training:  bool — if False (or drop_prob falsy) this is the identity.
    key:       PRNG key for the per-sample Bernoulli draw.
    """
    if drop_prob is None or drop_prob == 0.0 or not training:
        return x

    keep_prob = 1.0 - drop_prob
    if keep_prob <= 0.0:
        # drop_prob == 1: every path dropped; avoid 0/0 NaN from mask/keep_prob.
        return jnp.zeros_like(x)

    orig_shape = x.shape
    B = orig_shape[0]
    N = math.prod(orig_shape[1:])
    if B == 0 or N == 0:
        return x

    # Per-sample binary mask, exactly as the reference: floor(keep_prob + U).
    u = jax.random.uniform(key, (B,), dtype=jnp.float32)
    mask = jnp.floor(keep_prob + u)
    scale = mask / jnp.float32(keep_prob)          # (B,) f32, 0 or 1/keep_prob

    # ---- Lane-dense flattened layout: (R, 128) across the whole batch. ----
    n_pad = _round_up(N, _LANE)                    # pad each sample to 128 lanes
    nrows = n_pad // _LANE                         # rows per sample
    R = B * nrows                                  # total rows

    x2 = x.reshape(B, N)
    if n_pad != N:
        x2 = jnp.pad(x2, ((0, 0), (0, n_pad - N)))
    x_flat = x2.reshape(R, _LANE)

    # Per-row scale column (each sample's scale repeated over its rows).
    scale_col = jnp.repeat(scale, nrows)[:, None]  # (R, 1) f32

    # ---- Row tiling: ~2 MiB per pipeline buffer, multiple-of-8 rows. ----
    itemsize = jnp.dtype(x.dtype).itemsize
    rows_cap = max(_SUBLANE,
                   ((2 * 1024 * 1024) // (_LANE * itemsize)) // _SUBLANE * _SUBLANE)
    n_tiles = pl.cdiv(R, rows_cap)
    if n_tiles > 1 and n_tiles % 2 == 1:
        n_tiles += 1                               # balance v7x's 2 TensorCores
    rows_tile = _round_up(pl.cdiv(R, n_tiles), _SUBLANE)
    r_pad = rows_tile * n_tiles                    # no ragged trailing tile

    if r_pad != R:
        x_flat = jnp.pad(x_flat, ((0, r_pad - R), (0, 0)))
        scale_col = jnp.pad(scale_col, ((0, r_pad - R), (0, 0)))

    out_flat = pl.pallas_call(
        _drop_path_kernel,
        out_shape=jax.ShapeDtypeStruct((r_pad, _LANE), x.dtype),
        grid=(n_tiles,),
        in_specs=[
            pl.BlockSpec((rows_tile, 1), lambda t: (t, 0)),
            pl.BlockSpec((rows_tile, _LANE), lambda t: (t, 0)),
        ],
        out_specs=pl.BlockSpec((rows_tile, _LANE), lambda t: (t, 0)),
        compiler_params=pltpu.CompilerParams(
            dimension_semantics=("parallel",),
        ),
    )(scale_col, x_flat)

    # ---- Undo padding and restore the original shape. ----
    out = out_flat[:R].reshape(B, n_pad)
    if n_pad != N:
        out = out[:, :N]
    return out.reshape(orig_shape)


class DropPath:
    """JAX/Pallas counterpart of the PyTorch DropPath module."""

    def __init__(self, drop_prob=None):
        self.drop_prob = drop_prob
        self.training = True

    def __call__(self, x, key):
        return drop_path_pallas(
            x, self.drop_prob, training=self.training, key=key
        )


if __name__ == "__main__":
    root = jax.random.PRNGKey(0)
    k_x, k_mask = jax.random.split(root)

    B, C, H, W = 2, 4, 16, 16
    x = jax.random.normal(k_x, (B, C, H, W), dtype=jnp.float32)

    drop_prob = 0.25
    keep_prob = 1.0 - drop_prob
    module = DropPath(drop_prob)
    module.training = True

    # Reference mask (same key / same draw as the kernel wrapper).
    u = jax.random.uniform(k_mask, (B,), dtype=jnp.float32)
    mask = jnp.floor(keep_prob + u).reshape(B, 1, 1, 1)

    # --- f32 main path (N = C*H*W = 1024 -> flattened (16, 128) slab) ---
    out = jax.block_until_ready(module(x, k_mask))
    ref = x / keep_prob * mask
    assert jnp.allclose(out, ref, atol=1e-6, rtol=1e-6), "f32 mismatch vs ref"

    # --- bf16 input: multiply happens in f32, only final cast to bf16 ---
    x_bf16 = x.astype(jnp.bfloat16)
    out_bf16 = jax.block_until_ready(module(x_bf16, k_mask))
    ref_bf16 = (x_bf16.astype(jnp.float32) / keep_prob * mask).astype(jnp.bfloat16)
    assert jnp.allclose(
        out_bf16.astype(jnp.float32), ref_bf16.astype(jnp.float32),
        atol=1e-2, rtol=1e-2,
    ), "bf16 mismatch vs ref"

    # --- N not divisible by 128 exercises the pad-and-slice path ---
    x_odd = jax.random.normal(k_x, (B, 3, 5, 7), dtype=jnp.float32)
    out_odd = jax.block_until_ready(module(x_odd, k_mask))
    ref_odd = x_odd / keep_prob * mask
    assert jnp.allclose(out_odd, ref_odd, atol=1e-6, rtol=1e-6), "odd-shape mismatch"

    # --- larger batch exercises multi-tile grid + row padding ---
    x_big = jax.random.normal(k_x, (64, C, H, W), dtype=jnp.float32)
    u_big = jax.random.uniform(k_mask, (64,), dtype=jnp.float32)
    mask_big = jnp.floor(keep_prob + u_big).reshape(64, 1, 1, 1)
    out_big = jax.block_until_ready(module(x_big, k_mask))
    ref_big = x_big / keep_prob * mask_big
    assert jnp.allclose(out_big, ref_big, atol=1e-6, rtol=1e-6), "big-batch mismatch"

    # --- drop_prob = 1.0 must give zeros (no NaN) ---
    module_all = DropPath(1.0)
    out_all = jax.block_until_ready(module_all(x, k_mask))
    assert jnp.array_equal(out_all, jnp.zeros_like(x)), "drop_prob=1 should be zeros"

    # --- eval mode must be identity ---
    module.training = False
    out_eval = jax.block_until_ready(module(x, k_mask))
    assert jnp.array_equal(out_eval, x), "eval mode should be identity"

    print("KERNEL_OK")
</pallas_src>

<mosaic_0001>
module attributes {stable_mosaic.version = 11 : i64} {
  func.func @_drop_path_kernel(%arg0: i32, %arg1: memref<16x1xf32, #tpu.memory_space<vmem>>, %arg2: memref<16x128xf32, #tpu.memory_space<vmem>>, %arg3: memref<16x128xf32, #tpu.memory_space<vmem>>) attributes {dimension_semantics = [#tpu.dimension_semantics<parallel>], iteration_bounds = array<i64: 1>, scalar_prefetch = 0 : i64, scratch_operands = 0 : i64, tpu.core_type = #tpu.core_type<tc>, window_params = [{transform_indices = @transform_0, window_bounds = array<i64: 16, 1>}, {transform_indices = @transform_1, window_bounds = array<i64: 16, 128>}, {transform_indices = @transform_2, window_bounds = array<i64: 16, 128>}]} {
    %c0 = arith.constant 0 : index
    %c0_0 = arith.constant 0 : index
    %0 = vector.load %arg2[%c0, %c0_0] : memref<16x128xf32, #tpu.memory_space<vmem>>, vector<16x128xf32>
    %c0_1 = arith.constant 0 : index
    %c0_2 = arith.constant 0 : index
    %1 = vector.load %arg1[%c0_1, %c0_2] : memref<16x1xf32, #tpu.memory_space<vmem>>, vector<16x1xf32>
    %2 = vector.broadcast %1 : vector<16x1xf32> to vector<16x128xf32>
    %3 = arith.mulf %0, %2 : vector<16x128xf32>
    %c0_3 = arith.constant 0 : index
    %c0_4 = arith.constant 0 : index
    %4 = vector.load %arg3[%c0_3, %c0_4] : memref<16x128xf32, #tpu.memory_space<vmem>>, vector<16x128xf32>
    tpu.vector_store %arg3[%c0_3, %c0_4], %3 {strides = array<i32>} : memref<16x128xf32, #tpu.memory_space<vmem>>, vector<16x128xf32>,
    return
  }
  func.func @transform_0(%arg0: i32) -> (i32, i32) {
    %c0_i32 = arith.constant 0 : i32
    %c0_i32_0 = arith.constant 0 : i32
    return %arg0, %c0_i32 : i32, i32
  }
  func.func @transform_1(%arg0: i32) -> (i32, i32) {
    %c0_i32 = arith.constant 0 : i32
    %c0_i32_0 = arith.constant 0 : i32
    return %arg0, %c0_i32 : i32, i32
  }
  func.func @transform_2(%arg0: i32) -> (i32, i32) {
    %c0_i32 = arith.constant 0 : i32
    %c0_i32_0 = arith.constant 0 : i32
    return %arg0, %c0_i32 : i32, i32
  }
}

</mosaic_0001>

<llo_original>
// kernel: tpu_custom_call.1
$region0: #{tpu_custom_call.1}
  #allocation0 [shape = 'u32[]', space=smem, size = 0x4, offset = 0x4, fixed_abs, tag = 'smem constant byte address 0x4 - core index']
  #allocation1 [shape = 'u32[72,128]{1,0:T(1,128)}', space=vmem, size = 0x9000, scoped, tag = 'internal scratch']
  %s0 = inlined_call_operand.vmem [shape: f32[16,1], index: 0, kind: input, shape index: {}]
  %s1 = inlined_call_operand.vmem [shape: f32[16,128], index: 1, kind: input, shape index: {}]
  %s2 = inlined_call_operand.hbm [shape: f32[16,128], index: 2, kind: output, shape index: {}]
  %s3 = sld [smem:[#allocation0]]
  $region18: #{tpu_custom_call.1} parent=0
    _
  %s5 = ssub.s32 1, %s3
  %s6 = scalar_select 0, %s5, %s3
  $region1: #{tpu_custom_call.1} parent=0
    #allocation2 [shape = 'u8[8192]{0}', space=vmem, size = 0x2000, scoped, tag = 'output window, operand 0, single buffered']
    #allocation3 [shape = 's32[1]{0}', space=sflag, size = 0x4, scoped, tag = 'scoped memory for tpu_custom_call.1']
    %7 = vsyncpa [#allocation3], 0
    // Predicated region
    $region2: #{tpu_custom_call.1} parent=1 // pred_check
      _
    $region3: #{tpu_custom_call.1} parent=1 // pred_check_branch
      %9 = sbr.rel (0) target = $region5
    $region4: #{tpu_custom_call.1} parent=1 // pred_region
      _
    $region5: #{tpu_custom_call.1} parent=1 // pred_fallthru
      _
    // Predicated region
    $region6: #{tpu_custom_call.1} parent=1 // pred_check
      _
    $region7: #{tpu_custom_call.1} parent=1 // pred_check_branch
      %11 = sbr.rel (0) target = $region9
    $region8: #{tpu_custom_call.1} parent=1 // pred_region
      _
    $region9: #{tpu_custom_call.1} parent=1 // pred_fallthru
      _
    %v12 = vld [vmem:[%s1] sm:$0xff]
    %v13 = vld [vmem:[%s1 + $0x8] sm:$0xff]
    %v14 = vld [vmem:[%s0] sm:$0xff]
    %v15 = vld [vmem:[%s0 + $0x8] sm:$0xff]
    %17 = vset.pattern.permute.xlu0 0
    %18 = vperm.xlu0 %17, %v14
    %v19 = vpop.permute.xlu0 %18
    %22 = vset.pattern.permute.xlu0 0
    %23 = vperm.xlu0 %22, %v15
    %v24 = vpop.permute.xlu0 %23
    %v26 = vmul.f32 %v12, %v19
    %v27 = vmul.f32 %v13, %v24
    %28 = vst [vmem:[#allocation2] sm:$0xff] %v26
    %29 = vst [vmem:[#allocation2 + $0x8] sm:$0xff] %v27
    // Predicated region
    $region10: #{tpu_custom_call.1} parent=1 // pred_check
      _
    $region11: #{tpu_custom_call.1} parent=1 // pred_check_branch
      %31 = sbr.rel (0) target = $region13
    $region12: #{tpu_custom_call.1} parent=1 // pred_region
      %33 = vsyncadd [#allocation3], 0
      %s34 = sshll.u32 [#allocation2], 4
      %s35 = int_to_ptr.vmem [resolvable:$true] %s34
      %s36 = sshll.u32 %s2, 4
      %s37 = int_to_ptr.hbm [resolvable:$true] %s36
      %42 = dma.vmem_to_hbm [thread:$0]  %s35, 256, %s37, [#allocation3], 128, 128, 8
    $region13: #{tpu_custom_call.1} parent=1 // pred_fallthru
      _
    // Predicated region
    $region14: #{tpu_custom_call.1} parent=1 // pred_check
      _
    $region15: #{tpu_custom_call.1} parent=1 // pred_check_branch
      %44 = sbr.rel (0) target = $region17
    $region16: #{tpu_custom_call.1} parent=1 // pred_region
      %46 = dma.done [#allocation3], 256
    $region17: #{tpu_custom_call.1} parent=1 // pred_fallthru
      _
    %47 = vsyncpa [#allocation3], 1

</llo_original>
